<compile_context>
chip_gen: v7x
topology: tpu7x:2x2x1
jax: 0.10.0
libtpu: 0.0.40
codegen_flags: <defaults>
</compile_context>

<pallas_src>
import functools

import numpy as np
import jax
import jax.numpy as jnp
from jax import lax
from jax.experimental import pallas as pl
from jax.experimental.pallas import tpu as pltpu


_MAX_PLANES_PER_STEP = 32  # bound static unrolling of the per-plane dot loop


def make_kernel_np(k):
    """numpy version of the PyTorch make_kernel (outer product + normalize)."""
    k = np.asarray(k, dtype=np.float64)
    if k.ndim == 1:
        k = np.outer(k, k)
    return k / k.sum()


def _vmem_budget_bytes():
    """(buffer budget, vmem-limit cap) per TPU generation.

    v7x has only 64 MiB physical VMEM per TensorCore -> leave headroom.
    v5e/v6e (and v5p) have 128 MiB -> use more of it for bigger plane blocks.
    """
    try:
        kind = jax.devices()[0].device_kind.lower()
    except Exception:  # pragma: no cover - defensive
        kind = ""
    if ("v5" in kind) or ("v6" in kind):
        return 88 * 1024 * 1024, 104 * 1024 * 1024
    # v7x / unknown: conservative.
    return 44 * 1024 * 1024, 56 * 1024 * 1024


def _downsample_kernel(dh_ref, dwt_ref, x_ref, o_ref, *, nb):
    # dh_ref : (out_h, h)        banded vertical FIR+decimate matrix (f32)
    # dwt_ref: (w, out_w)        banded horizontal FIR+decimate matrix, transposed
    # x_ref  : (nb, h, w)        block of input planes
    # o_ref  : (nb, out_h, out_w)
    dh = dh_ref[...]
    dwt = dwt_ref[...]
    # Per plane: two MXU dots, result written exactly once (no RMW scratch
    # traffic, no zero-init of full tiles).
    for i in range(nb):
        xi = x_ref[i].astype(jnp.float32)                               # (h, w)
        t = jnp.dot(dh, xi, preferred_element_type=jnp.float32)         # (out_h, w)
        y = jnp.dot(t, dwt, preferred_element_type=jnp.float32)         # (out_h, out_w)
        o_ref[i] = y.astype(o_ref.dtype)


def downsample(x, kernel_1d=(1.0, 3.0, 3.0, 1.0), factor=2):
    """Equivalent of Downsample(kernel_1d, factor).forward(x), x in NCHW."""
    k1 = np.asarray(kernel_1d, dtype=np.float64)
    assert k1.ndim == 1, "separable fast path expects a 1-D blur kernel"
    k1n = k1 / k1.sum()              # outer(k1n, k1n) == make_kernel(kernel_1d)
    kh = kw = int(k1n.size)
    down = int(factor)
    p = kh - down
    pad0, pad1 = (p + 1) // 2, p // 2

    n, c, h, w = x.shape
    b = n * c
    out_h = (h + pad0 + pad1 - kh) // down + 1
    out_w = (w + pad0 + pad1 - kw) // down + 1

    # upfirdn2d convolves with the flipped kernel (true convolution).
    taps = k1n[::-1]

    # Banded decimating-FIR matrices; zero padding fused (invalid taps dropped).
    dh_np = np.zeros((out_h, h), np.float32)
    for i in range(out_h):
        for u, wt in enumerate(taps):
            r = i * down + u - pad0
            if 0 <= r < h:
                dh_np[i, r] += wt
    dw_np = np.zeros((out_w, w), np.float32)
    for j in range(out_w):
        for v, wt in enumerate(taps):
            col = j * down + v - pad0
            if 0 <= col < w:
                dw_np[j, col] += wt
    dh = jnp.asarray(dh_np)          # (out_h, h)
    dwt = jnp.asarray(dw_np.T)       # (w, out_w)

    # NCHW -> (B, H, W) is a pure reshape (no HBM transpose round trip).
    xr = x.reshape(b, h, w)

    # --- pick planes-per-step from the per-generation VMEM budget ---
    itemsize = jnp.dtype(x.dtype).itemsize
    per_plane = (2 * h * w * itemsize            # double-buffered input block
                 + 2 * out_h * out_w * itemsize  # double-buffered output block
                 + out_h * w * 4)                # f32 intermediate T = D_h @ X
    buf_budget, limit_cap = _vmem_budget_bytes()
    nb = max(1, min(buf_budget // max(per_plane, 1), _MAX_PLANES_PER_STEP))
    if b >= 2:
        nb = min(nb, max(1, b // 2))   # >= 2 grid steps -> both TCs usable (v7x)
    nb = min(int(nb), b)
    while b % nb != 0:                 # exact tiling of B (no masked stores)
        nb -= 1

    grid = (b // nb,)

    est = nb * per_plane + 2 * (out_h * h + w * out_w) * 4 + (2 << 20)
    vmem_limit = int(max(32 * 1024 * 1024, min(est, limit_cap)))

    kern = functools.partial(_downsample_kernel, nb=nb)

    out = pl.pallas_call(
        kern,
        out_shape=jax.ShapeDtypeStruct((b, out_h, out_w), x.dtype),
        grid=grid,
        in_specs=[
            pl.BlockSpec((out_h, h), lambda i: (0, 0)),      # D_h   (resident)
            pl.BlockSpec((w, out_w), lambda i: (0, 0)),      # D_w^T (resident)
            pl.BlockSpec((nb, h, w), lambda i: (i, 0, 0)),   # plane block
        ],
        out_specs=pl.BlockSpec((nb, out_h, out_w), lambda i: (i, 0, 0)),
        compiler_params=pltpu.CompilerParams(
            dimension_semantics=("parallel",),
            vmem_limit_bytes=vmem_limit),
    )(dh, dwt, xr)

    return out.reshape(n, c, out_h, out_w)


def _reference(x, kernel_1d, factor):
    """Pure-JAX reference mirroring upfirdn2d(up=1, down=factor, pad=(pad0,pad1))."""
    k2d = np.asarray(make_kernel_np(kernel_1d), dtype=np.float32)
    kh, kw = k2d.shape
    p = kh - factor
    pad0, pad1 = (p + 1) // 2, p // 2
    n, c, h, w = x.shape
    xr = x.reshape(n * c, 1, h, w)
    wf = jnp.asarray(k2d[::-1, ::-1].copy()).reshape(1, 1, kh, kw)
    out = lax.conv_general_dilated(
        xr, wf,
        window_strides=(factor, factor),
        padding=((pad0, pad1), (pad0, pad1)))
    return np.asarray(out).reshape(n, c, out.shape[2], out.shape[3])


if __name__ == "__main__":
    key = jax.random.PRNGKey(0)
    # Matches nn.Module usage: Downsample(kernel=[1, 3, 3, 1], factor=2)
    x = jax.random.normal(key, (2, 4, 16, 16), dtype=jnp.float32)

    y = downsample(x, kernel_1d=(1.0, 3.0, 3.0, 1.0), factor=2)
    y = jax.block_until_ready(y)

    assert y.shape == (2, 4, 8, 8), y.shape
    y_ref = _reference(x, (1.0, 3.0, 3.0, 1.0), 2)
    np.testing.assert_allclose(np.asarray(y), y_ref, rtol=1e-5, atol=1e-5)

    print("KERNEL_OK")
</pallas_src>

<mosaic_0001>
module attributes {stable_mosaic.version = 11 : i64} {
  func.func @_downsample_kernel(%arg0: i32, %arg1: memref<8x16xf32, #tpu.memory_space<vmem>>, %arg2: memref<16x8xf32, #tpu.memory_space<vmem>>, %arg3: memref<4x16x16xf32, #tpu.memory_space<vmem>>, %arg4: memref<4x8x8xf32, #tpu.memory_space<vmem>>) attributes {dimension_semantics = [#tpu.dimension_semantics<parallel>], iteration_bounds = array<i64: 2>, scalar_prefetch = 0 : i64, scratch_operands = 0 : i64, tpu.core_type = #tpu.core_type<tc>, window_params = [{pipeline_mode = #tpu.pipeline_mode<synchronous>, transform_indices = @transform_0, window_bounds = array<i64: 8, 16>}, {pipeline_mode = #tpu.pipeline_mode<synchronous>, transform_indices = @transform_1, window_bounds = array<i64: 16, 8>}, {transform_indices = @transform_2, window_bounds = array<i64: 4, 16, 16>}, {transform_indices = @transform_3, window_bounds = array<i64: 4, 8, 8>}]} {
    %c0 = arith.constant 0 : index
    %c0_0 = arith.constant 0 : index
    %0 = vector.load %arg1[%c0, %c0_0] : memref<8x16xf32, #tpu.memory_space<vmem>>, vector<8x16xf32>
    %c0_1 = arith.constant 0 : index
    %c0_2 = arith.constant 0 : index
    %1 = vector.load %arg2[%c0_1, %c0_2] : memref<16x8xf32, #tpu.memory_space<vmem>>, vector<16x8xf32>
    %c0_3 = arith.constant 0 : index
    %c0_4 = arith.constant 0 : index
    %c0_5 = arith.constant 0 : index
    %2 = vector.load %arg3[%c0_3, %c0_4, %c0_5] : memref<4x16x16xf32, #tpu.memory_space<vmem>>, vector<1x16x16xf32>
    %3 = vector.shape_cast %2 : vector<1x16x16xf32> to vector<16x16xf32>
    %cst = arith.constant dense<0.000000e+00> : vector<8x16xf32>
    %4 = tpu.matmul %0, %3, %cst {dimension_numbers = #tpu.dot_dimension_numbers<[1], [0], [0], [1], [0, 0, 1, 1], [], []>} : vector<8x16xf32>, vector<16x16xf32>, vector<8x16xf32> -> vector<8x16xf32>
    %cst_6 = arith.constant dense<0.000000e+00> : vector<8x8xf32>
    %5 = tpu.matmul %4, %1, %cst_6 {dimension_numbers = #tpu.dot_dimension_numbers<[1], [0], [0], [1], [0, 0, 1, 1], [], []>} : vector<8x16xf32>, vector<16x8xf32>, vector<8x8xf32> -> vector<8x8xf32>
    %c0_7 = arith.constant 0 : index
    %c0_8 = arith.constant 0 : index
    %c0_9 = arith.constant 0 : index
    %6 = vector.load %arg4[%c0_7, %c0_8, %c0_9] : memref<4x8x8xf32, #tpu.memory_space<vmem>>, vector<1x8x8xf32>
    %7 = vector.shape_cast %6 : vector<1x8x8xf32> to vector<8x8xf32>
    %8 = vector.shape_cast %5 : vector<8x8xf32> to vector<1x8x8xf32>
    tpu.vector_store %arg4[%c0_7, %c0_8, %c0_9], %8 {strides = array<i32>} : memref<4x8x8xf32, #tpu.memory_space<vmem>>, vector<1x8x8xf32>,
    %c1 = arith.constant 1 : index
    %c0_10 = arith.constant 0 : index
    %c0_11 = arith.constant 0 : index
    %9 = vector.load %arg3[%c1, %c0_10, %c0_11] : memref<4x16x16xf32, #tpu.memory_space<vmem>>, vector<1x16x16xf32>
    %10 = vector.shape_cast %9 : vector<1x16x16xf32> to vector<16x16xf32>
    %cst_12 = arith.constant dense<0.000000e+00> : vector<8x16xf32>
    %11 = tpu.matmul %0, %10, %cst_12 {dimension_numbers = #tpu.dot_dimension_numbers<[1], [0], [0], [1], [0, 0, 1, 1], [], []>} : vector<8x16xf32>, vector<16x16xf32>, vector<8x16xf32> -> vector<8x16xf32>
    %cst_13 = arith.constant dense<0.000000e+00> : vector<8x8xf32>
    %12 = tpu.matmul %11, %1, %cst_13 {dimension_numbers = #tpu.dot_dimension_numbers<[1], [0], [0], [1], [0, 0, 1, 1], [], []>} : vector<8x16xf32>, vector<16x8xf32>, vector<8x8xf32> -> vector<8x8xf32>
    %c1_14 = arith.constant 1 : index
    %c0_15 = arith.constant 0 : index
    %c0_16 = arith.constant 0 : index
    %13 = vector.load %arg4[%c1_14, %c0_15, %c0_16] : memref<4x8x8xf32, #tpu.memory_space<vmem>>, vector<1x8x8xf32>
    %14 = vector.shape_cast %13 : vector<1x8x8xf32> to vector<8x8xf32>
    %15 = vector.shape_cast %12 : vector<8x8xf32> to vector<1x8x8xf32>
    tpu.vector_store %arg4[%c1_14, %c0_15, %c0_16], %15 {strides = array<i32>} : memref<4x8x8xf32, #tpu.memory_space<vmem>>, vector<1x8x8xf32>,
    %c2 = arith.constant 2 : index
    %c0_17 = arith.constant 0 : index
    %c0_18 = arith.constant 0 : index
    %16 = vector.load %arg3[%c2, %c0_17, %c0_18] : memref<4x16x16xf32, #tpu.memory_space<vmem>>, vector<1x16x16xf32>
    %17 = vector.shape_cast %16 : vector<1x16x16xf32> to vector<16x16xf32>
    %cst_19 = arith.constant dense<0.000000e+00> : vector<8x16xf32>
    %18 = tpu.matmul %0, %17, %cst_19 {dimension_numbers = #tpu.dot_dimension_numbers<[1], [0], [0], [1], [0, 0, 1, 1], [], []>} : vector<8x16xf32>, vector<16x16xf32>, vector<8x16xf32> -> vector<8x16xf32>
    %cst_20 = arith.constant dense<0.000000e+00> : vector<8x8xf32>
    %19 = tpu.matmul %18, %1, %cst_20 {dimension_numbers = #tpu.dot_dimension_numbers<[1], [0], [0], [1], [0, 0, 1, 1], [], []>} : vector<8x16xf32>, vector<16x8xf32>, vector<8x8xf32> -> vector<8x8xf32>
    %c2_21 = arith.constant 2 : index
    %c0_22 = arith.constant 0 : index
    %c0_23 = arith.constant 0 : index
    %20 = vector.load %arg4[%c2_21, %c0_22, %c0_23] : memref<4x8x8xf32, #tpu.memory_space<vmem>>, vector<1x8x8xf32>
    %21 = vector.shape_cast %20 : vector<1x8x8xf32> to vector<8x8xf32>
    %22 = vector.shape_cast %19 : vector<8x8xf32> to vector<1x8x8xf32>
    tpu.vector_store %arg4[%c2_21, %c0_22, %c0_23], %22 {strides = array<i32>} : memref<4x8x8xf32, #tpu.memory_space<vmem>>, vector<1x8x8xf32>,
    %c3 = arith.constant 3 : index
    %c0_24 = arith.constant 0 : index
    %c0_25 = arith.constant 0 : index
    %23 = vector.load %arg3[%c3, %c0_24, %c0_25] : memref<4x16x16xf32, #tpu.memory_space<vmem>>, vector<1x16x16xf32>
    %24 = vector.shape_cast %23 : vector<1x16x16xf32> to vector<16x16xf32>
    %cst_26 = arith.constant dense<0.000000e+00> : vector<8x16xf32>
    %25 = tpu.matmul %0, %24, %cst_26 {dimension_numbers = #tpu.dot_dimension_numbers<[1], [0], [0], [1], [0, 0, 1, 1], [], []>} : vector<8x16xf32>, vector<16x16xf32>, vector<8x16xf32> -> vector<8x16xf32>
    %cst_27 = arith.constant dense<0.000000e+00> : vector<8x8xf32>
    %26 = tpu.matmul %25, %1, %cst_27 {dimension_numbers = #tpu.dot_dimension_numbers<[1], [0], [0], [1], [0, 0, 1, 1], [], []>} : vector<8x16xf32>, vector<16x8xf32>, vector<8x8xf32> -> vector<8x8xf32>
    %c3_28 = arith.constant 3 : index
    %c0_29 = arith.constant 0 : index
    %c0_30 = arith.constant 0 : index
    %27 = vector.load %arg4[%c3_28, %c0_29, %c0_30] : memref<4x8x8xf32, #tpu.memory_space<vmem>>, vector<1x8x8xf32>
    %28 = vector.shape_cast %27 : vector<1x8x8xf32> to vector<8x8xf32>
    %29 = vector.shape_cast %26 : vector<8x8xf32> to vector<1x8x8xf32>
    tpu.vector_store %arg4[%c3_28, %c0_29, %c0_30], %29 {strides = array<i32>} : memref<4x8x8xf32, #tpu.memory_space<vmem>>, vector<1x8x8xf32>,
    return
  }
  func.func @transform_0(%arg0: i32) -> (i32, i32) {
    %c0_i32 = arith.constant 0 : i32
    %c0_i32_0 = arith.constant 0 : i32
    %c0_i32_1 = arith.constant 0 : i32
    return %c0_i32, %c0_i32_0 : i32, i32
  }
  func.func @transform_1(%arg0: i32) -> (i32, i32) {
    %c0_i32 = arith.constant 0 : i32
    %c0_i32_0 = arith.constant 0 : i32
    %c0_i32_1 = arith.constant 0 : i32
    return %c0_i32, %c0_i32_0 : i32, i32
  }
  func.func @transform_2(%arg0: i32) -> (i32, i32, i32) {
    %c0_i32 = arith.constant 0 : i32
    %c0_i32_0 = arith.constant 0 : i32
    %c0_i32_1 = arith.constant 0 : i32
    return %arg0, %c0_i32, %c0_i32_0 : i32, i32, i32
  }
  func.func @transform_3(%arg0: i32) -> (i32, i32, i32) {
    %c0_i32 = arith.constant 0 : i32
    %c0_i32_0 = arith.constant 0 : i32
    %c0_i32_1 = arith.constant 0 : i32
    return %arg0, %c0_i32, %c0_i32_0 : i32, i32, i32
  }
}

</mosaic_0001>

<llo_original>
// kernel: tpu_custom_call.1
$region0: #{tpu_custom_call.1}
  #allocation0 [shape = 'u32[]', space=smem, size = 0x4, offset = 0x4, fixed_abs, tag = 'smem constant byte address 0x4 - core index']
  #allocation1 [shape = 'u32[144,128]{1,0:T(1,128)}', space=vmem, size = 0x12000, scoped, tag = 'internal scratch']
  %s0 = inlined_call_operand.vmem [shape: f32[8,16], index: 0, kind: input, shape index: {}]
  %s1 = inlined_call_operand.vmem [shape: f32[16,8], index: 1, kind: input, shape index: {}]
  %s2 = inlined_call_operand.hbm [shape: f32[8,16,16], index: 2, kind: input, shape index: {}]
  %s3 = inlined_call_operand.hbm [shape: f32[8,8,8], index: 3, kind: output, shape index: {}]
  %s4 = sld [smem:[#allocation0]]
  $region49: #{tpu_custom_call.1} parent=0
    _
  %s6 = ssub.s32 1, %s4
  %s7 = scalar_select 0, %s6, %s4
  $region1: #{tpu_custom_call.1} parent=0
    #allocation2 [shape = 'u8[65536]{0}', space=vmem, size = 0x10000, scoped, tag = 'input window, operand 2']
    #allocation3 [shape = 's32[2]{0}', space=sflag, size = 0x8, scoped, tag = 'scoped memory for tpu_custom_call.1']
    #allocation4 [shape = 's32[2]{0}', space=sflag, size = 0x8, scoped, tag = 'scoped memory for tpu_custom_call.1']
    #allocation5 [shape = 'u8[32768]{0}', space=vmem, size = 0x8000, scoped, tag = 'output window, operand 0']
    %8 = vsyncpa [#allocation3], 0
    %s9 = scalar_lea.sflag [#allocation3], 1
    %10 = vsyncpa %s9, 0
    %11 = vsyncpa [#allocation4], 0
    %s12 = scalar_lea.sflag [#allocation4], 1
    %13 = vsyncpa %s12, 0
    loop: start=0, step=1, limit=4
    $region2: #{tpu_custom_call.1} parent=1 // loop_pre_header
      _
    $region3: #{tpu_custom_call.1} parent=1 // loop_header
      %s15 = sphi 0, %s19
      %p16 = scmp.ge.s32.totalorder %s15, 4
      %s23 = sphi 0, %s23
      %s25 = sphi 0, %s23
      %s26 = sphi 0, %s25
      %s40 = sphi 0, %s26
      %s44 = sphi 0, %s44
      %s46 = sphi 0, %s44
      %s47 = sphi 0, %s46
      %s61 = sphi 0, %s47
      %s67 = sphi 0, %s69
      %s70 = sphi 0, %s67
      %s71 = sphi 0, %s70
      %s87 = sphi 0, %s71
      %s93 = sphi 0, %s95
      %s96 = sphi 0, %s93
      %s97 = sphi 0, %s96
      %s113 = sphi 0, %s97
    $region4: #{tpu_custom_call.1} parent=1 // loop_header_branch
      %18 = sbr.rel (%p16) target = $region8
    $region5: #{tpu_custom_call.1} parent=1 // loop_body
      %s20 = ssub.s32 %s15, 1
      %s21 = ssub.s32 %s15, 2
      %s22 = sadd.s32 %s15, 1
      %s24 = sadd.s32 %s23, 1
      %p27 = scmp.eq.s32.totalorder %s15, 1
      %p28 = scmp.ne.s32.totalorder %s23, %s25
      %p29 = scmp.eq.s32.totalorder %s15, 0
      %p30 = por %p28, %p29
      %p31 = scmp.ne.s32.totalorder %s23, %s25
      %p32 = scmp.eq.s32.totalorder %s20, 1
      %p33 = por %p31, %p32
      %p34 = scmp.ne.s32.totalorder %s25, %s26
      %p35 = scmp.eq.s32.totalorder %s20, 0
      %p36 = por %p34, %p35
      %p37 = scmp.ne.s32.totalorder %s25, %s26
      %p38 = scmp.eq.s32.totalorder %s21, 1
      %p39 = por %p37, %p38
      %p41 = scmp.ne.s32.totalorder %s26, %s40
      %p42 = scmp.eq.s32.totalorder %s21, 0
      %p43 = por %p41, %p42
      %s45 = sadd.s32 %s44, 1
      %p48 = scmp.eq.s32.totalorder %s15, 1
      %p49 = scmp.ne.s32.totalorder %s44, %s46
      %p50 = scmp.eq.s32.totalorder %s15, 0
      %p51 = por %p49, %p50
      %p52 = scmp.ne.s32.totalorder %s44, %s46
      %p53 = scmp.eq.s32.totalorder %s20, 1
      %p54 = por %p52, %p53
      %p55 = scmp.ne.s32.totalorder %s46, %s47
      %p56 = scmp.eq.s32.totalorder %s20, 0
      %p57 = por %p55, %p56
      %p58 = scmp.ne.s32.totalorder %s46, %s47
      %p59 = scmp.eq.s32.totalorder %s21, 1
      %p60 = por %p58, %p59
      %p62 = scmp.ne.s32.totalorder %s47, %s61
      %p63 = scmp.eq.s32.totalorder %s21, 0
      %p64 = por %p62, %p63
      %s65 = ssub.s32 %s15, %s22
      %p66 = scmp.eq.s32.totalorder %s65, 0
      %s68 = sadd.s32 %s67, 1
      %s69 = scalar_select %p66, %s67, %s68
      %p72 = pneg %p66
      %p73 = scmp.eq.s32.totalorder %s15, 1
      %p74 = por %p72, %p73
      %p75 = scmp.ne.s32.totalorder %s67, %s70
      %p76 = scmp.eq.s32.totalorder %s15, 0
      %p77 = por %p75, %p76
      %p78 = scmp.ne.s32.totalorder %s67, %s70
      %p79 = scmp.eq.s32.totalorder %s20, 1
      %p80 = por %p78, %p79
      %p81 = scmp.ne.s32.totalorder %s70, %s71
      %p82 = scmp.eq.s32.totalorder %s20, 0
      %p83 = por %p81, %p82
      %p84 = scmp.ne.s32.totalorder %s70, %s71
      %p85 = scmp.eq.s32.totalorder %s21, 1
      %p86 = por %p84, %p85
      %p88 = scmp.ne.s32.totalorder %s71, %s87
      %p89 = scmp.eq.s32.totalorder %s21, 0
      %p90 = por %p88, %p89
      %s91 = ssub.s32 %s15, %s22
      %p92 = scmp.eq.s32.totalorder %s91, 0
      %s94 = sadd.s32 %s93, 1
      %s95 = scalar_select %p92, %s93, %s94
      %p98 = pneg %p92
      %p99 = scmp.eq.s32.totalorder %s15, 1
      %p100 = por %p98, %p99
      %p101 = scmp.ne.s32.totalorder %s93, %s96
      %p102 = scmp.eq.s32.totalorder %s15, 0
      %p103 = por %p101, %p102
      %p104 = scmp.ne.s32.totalorder %s93, %s96
      %p105 = scmp.eq.s32.totalorder %s20, 1
      %p106 = por %p104, %p105
      %p107 = scmp.ne.s32.totalorder %s96, %s97
      %p108 = scmp.eq.s32.totalorder %s20, 0
      %p109 = por %p107, %p108
      %p110 = scmp.ne.s32.totalorder %s96, %s97
      %p111 = scmp.eq.s32.totalorder %s21, 1
      %p112 = por %p110, %p111
      %p114 = scmp.ne.s32.totalorder %s97, %s113
      %p115 = scmp.eq.s32.totalorder %s21, 0
      %p116 = por %p114, %p115
      %p117 = scmp.le.s32.totalorder 1, %s15
      %p118 = scmp.lt.s32.totalorder %s15, 3
      %p119 = pnand %p117, %p118
      %p120 = pneg %p119
      // Predicated region
      $region9: #{tpu_custom_call.1} parent=5 // pred_check
        _
      $region10: #{tpu_custom_call.1} parent=5 // pred_check_branch
        %122 = sbr.rel (%p119) target = $region12
      $region11: #{tpu_custom_call.1} parent=5 // pred_region
        %s123 = ssub.s32 %s15, 1
        // Predicated region
        $region13: #{tpu_custom_call.1} parent=11 // pred_check
          %p124 = pneg %p36
        $region14: #{tpu_custom_call.1} parent=11 // pred_check_branch
          %126 = sbr.rel (%p124) target = $region16
        $region15: #{tpu_custom_call.1} parent=11 // pred_region
          _
        $region16: #{tpu_custom_call.1} parent=11 // pred_fallthru
          _
        // Predicated region
        $region17: #{tpu_custom_call.1} parent=11 // pred_check
          %p127 = pneg %p57
        $region18: #{tpu_custom_call.1} parent=11 // pred_check_branch
          %129 = sbr.rel (%p127) target = $region20
        $region19: #{tpu_custom_call.1} parent=11 // pred_region
          _
        $region20: #{tpu_custom_call.1} parent=11 // pred_fallthru
          _
      $region12: #{tpu_custom_call.1} parent=5 // pred_fallthru
        _
      %p130 = scmp.lt.s32.totalorder %s15, 2
      // Predicated region
      $region21: #{tpu_custom_call.1} parent=5 // pred_check
        %p131 = pneg %p130
      $region22: #{tpu_custom_call.1} parent=5 // pred_check_branch
        %133 = sbr.rel (%p131) target = $region24
      $region23: #{tpu_custom_call.1} parent=5 // pred_region
        // Predicated region
        $region25: #{tpu_custom_call.1} parent=23 // pred_check
          %p134 = pneg %p77
        $region26: #{tpu_custom_call.1} parent=23 // pred_check_branch
          %136 = sbr.rel (%p134) target = $region28
        $region27: #{tpu_custom_call.1} parent=23 // pred_region
          %s137 = sand.u32 %s67, 1
          %s138 = scalar_lea.sflag [#allocation3], %s137
          %s139 = sand.u32 %s67, 1
          %s140 = smul.addr %s139, 64
          %s141 = scalar_lea.vmem [#allocation2], %s140
          %s142 = smul.u32 4, %s15
          %s144 = ssub.s32 1024, 1024
          %145 = vsyncadd %s138, %s144
          %s146 = smul.addr %s142, 2
          %s147 = smul.addr %s146, 128
          %s148 = scalar_lea.hbm %s2, %s147
          %s149 = sshll.u32 %s141, 4
          %s150 = int_to_ptr.vmem [resolvable:$true] %s149
          %155 = dma.hbm_to_vmem [thread:$0]  %s148, 1024, %s150, %s138, 128, 128, 8
        $region28: #{tpu_custom_call.1} parent=23 // pred_fallthru
          _
      $region24: #{tpu_custom_call.1} parent=5 // pred_fallthru
        _
      %p156 = scmp.le.s32.totalorder 1, %s15
      %p157 = scmp.lt.s32.totalorder %s15, 3
      %p158 = pnand %p156, %p157
      %p159 = pneg %p158
      // Predicated region
      $region29: #{tpu_custom_call.1} parent=5 // pred_check
        _
      $region30: #{tpu_custom_call.1} parent=5 // pred_check_branch
        %161 = sbr.rel (%p158) target = $region32
      $region31: #{tpu_custom_call.1} parent=5 // pred_region
        %s162 = ssub.s32 %s15, 1
        %s163 = sand.u32 %s70, 1
        %s164 = scalar_lea.sflag [#allocation3], %s163
        %s165 = sand.u32 %s70, 1
        %s166 = smul.addr %s165, 64
        %s167 = scalar_lea.vmem [#allocation2], %s166
        // Predicated region
        $region33: #{tpu_custom_call.1} parent=31 // pred_check
          %p168 = pneg %p83
        $region34: #{tpu_custom_call.1} parent=31 // pred_check_branch
          %170 = sbr.rel (%p168) target = $region36
        $region35: #{tpu_custom_call.1} parent=31 // pred_region
          %171 = dma.done %s164, 1024
        $region36: #{tpu_custom_call.1} parent=31 // pred_fallthru
          _
        %p172 = pneg %p36
        %p173 = pneg %p33
        %p174 = pneg %p57
        %p175 = pneg %p54
        %s176 = sand.u32 %s70, 1
        %s177 = scalar_lea.sflag [#allocation3], %s176
        %s178 = sand.u32 %s70, 1
        %s179 = smul.addr %s178, 64
        %s180 = scalar_lea.vmem [#allocation2], %s179
        %p181 = pneg %p83
        %p182 = pneg %p80
        %p183 = pneg %p109
        %p184 = pneg %p106
        %s185 = sand.u32 %s96, 1
        %s186 = scalar_lea.sflag [#allocation4], %s185
        %s187 = sand.u32 %s96, 1
        %s188 = smul.addr %s187, 32
        %s189 = scalar_lea.vmem [#allocation5], %s188
        %s190 = smul.u32 4, %s20
        %s191 = smul.u32 4, %s20
        %v192 = vld [vmem:[%s0] sm:$0xff]
        %v193 = vld [vmem:[%s1] sm:$0xff]
        %v194 = vld [vmem:[%s1 + $0x8] sm:$0xff]
        %v195 = vld [vmem:[%s167] sm:$0xff]
        %v196 = vld [vmem:[%s167 + $0x8] sm:$0xff]
        %vm197 = vcmask 130048
        %v199 = vsel %vm197, %v192, 0
        %201 = vmatprep.subr.mxu0 0.0
        %202 = vmatpush1.msra.mxu0 %v195
        %203 = vmatprep.subr.mxu0 0.0
        %204 = vmatpush1.msra.mxu0 %v196
        %205 = vmatprep.subr.mxu0 0.0
        %206 = vmatpush1.msra.mxu0 0.0
        %207 = vmatprep.subr.mxu0 0.0
        %208 = vmatpush1.msra.mxu0 0.0
        %209 = vmatprep.subr.mxu0 0.0
        %210 = vmatpush1.msra.mxu0 0.0
        %211 = vmatprep.subr.mxu0 0.0
        %212 = vmatpush1.msra.mxu0 0.0
        %213 = vmatprep.subr.mxu0 0.0
        %214 = vmatpush1.msra.mxu0 0.0
        %215 = vmatprep.subr.mxu0 0.0
        %216 = vmatpush1.msra.mxu0 0.0
        %217 = vmatprep.subr.mxu0 0.0
        %218 = vmatpush1.msra.mxu0 0.0
        %219 = vmatprep.subr.mxu0 0.0
        %220 = vmatpush1.msra.mxu0 0.0
        %221 = vmatprep.subr.mxu0 0.0
        %222 = vmatpush1.msra.mxu0 0.0
        %223 = vmatprep.subr.mxu0 0.0
        %224 = vmatpush1.msra.mxu0 0.0
        %225 = vmatprep.subr.mxu0 0.0
        %226 = vmatpush1.msra.mxu0 0.0
        %227 = vmatprep.subr.mxu0 0.0
        %228 = vmatpush1.msra.mxu0 0.0
        %229 = vmatprep.subr.mxu0 0.0
        %230 = vmatpush1.msra.mxu0 0.0
        %231 = vmatprep.subr.mxu0 0.0
        %232 = vmatpush1.msra.mxu0 0.0
        %233 = vmatprep.subr.mxu0 0.0
        %234 = vmatpush1.msra.mxu0 0.0
        %235 = vmatprep.subr.mxu0 0.0
        %236 = vmatpush1.msra.mxu0 0.0
        %237 = vmatprep.subr.mxu0 0.0
        %238 = vmatpush1.msra.mxu0 0.0
        %239 = vmatprep.subr.mxu0 0.0
        %240 = vmatpush1.msra.mxu0 0.0
        %241 = vmatprep.subr.mxu0 0.0
        %242 = vmatpush1.msra.mxu0 0.0
        %243 = vmatprep.subr.mxu0 0.0
        %244 = vmatpush1.msra.mxu0 0.0
        %245 = vmatprep.subr.mxu0 0.0
        %246 = vmatpush1.msra.mxu0 0.0
        %247 = vmatprep.subr.mxu0 0.0
        %248 = vmatpush1.msra.mxu0 0.0
        %249 = vmatprep.subr.mxu0 0.0
        %250 = vmatpush1.msra.mxu0 0.0
        %251 = vmatprep.subr.mxu0 0.0
        %252 = vmatpush1.msra.mxu0 0.0
        %253 = vmatprep.subr.mxu0 0.0
        %254 = vmatpush1.msra.mxu0 0.0
        %255 = vmatprep.subr.mxu0 0.0
        %256 = vmatpush1.msra.mxu0 0.0
        %257 = vmatprep.subr.mxu0 0.0
        %258 = vmatpush1.msra.mxu0 0.0
        %259 = vmatprep.subr.mxu0 0.0
        %260 = vmatpush1.msra.mxu0 0.0
        %261 = vmatprep.subr.mxu0 0.0
        %262 = vmatpush1.msra.mxu0 0.0
        %263 = vmatprep.subr.mxu0 0.0
        %264 = vmatpush1.msra.mxu0 0.0
        %265 = vmatprep.mubr.f32.mxu0 0.0
        %266 = vmatmul.mubr.f32.gmra.mrb[0].mxu0 %v199
        %v267 = vpop.f32.mrb[0].mxu0
        %v268 = vadd.f32 0.0, %v267
        %v269 = vpop.f32.mrb[0].mxu0
        %270 = vdwg.mxu0
        %v272 = vsel %vm197, %v268, 0
        %274 = vmatprep.subr.mxu0 0.0
        %275 = vmatpush1.msra.mxu0 %v193
        %276 = vmatprep.subr.mxu0 0.0
        %277 = vmatpush1.msra.mxu0 %v194
        %278 = vmatprep.subr.mxu0 0.0
        %279 = vmatpush1.msra.mxu0 0.0
        %280 = vmatprep.subr.mxu0 0.0
        %281 = vmatpush1.msra.mxu0 0.0
        %282 = vmatprep.subr.mxu0 0.0
        %283 = vmatpush1.msra.mxu0 0.0
        %284 = vmatprep.subr.mxu0 0.0
        %285 = vmatpush1.msra.mxu0 0.0
        %286 = vmatprep.subr.mxu0 0.0
        %287 = vmatpush1.msra.mxu0 0.0
        %288 = vmatprep.subr.mxu0 0.0
        %289 = vmatpush1.msra.mxu0 0.0
        %290 = vmatprep.subr.mxu0 0.0
        %291 = vmatpush1.msra.mxu0 0.0
        %292 = vmatprep.subr.mxu0 0.0
        %293 = vmatpush1.msra.mxu0 0.0
        %294 = vmatprep.subr.mxu0 0.0
        %295 = vmatpush1.msra.mxu0 0.0
        %296 = vmatprep.subr.mxu0 0.0
        %297 = vmatpush1.msra.mxu0 0.0
        %298 = vmatprep.subr.mxu0 0.0
        %299 = vmatpush1.msra.mxu0 0.0
        %300 = vmatprep.subr.mxu0 0.0
        %301 = vmatpush1.msra.mxu0 0.0
        %302 = vmatprep.subr.mxu0 0.0
        %303 = vmatpush1.msra.mxu0 0.0
        %304 = vmatprep.subr.mxu0 0.0
        %305 = vmatpush1.msra.mxu0 0.0
        %306 = vmatprep.subr.mxu0 0.0
        %307 = vmatpush1.msra.mxu0 0.0
        %308 = vmatprep.subr.mxu0 0.0
        %309 = vmatpush1.msra.mxu0 0.0
        %310 = vmatprep.subr.mxu0 0.0
        %311 = vmatpush1.msra.mxu0 0.0
        %312 = vmatprep.subr.mxu0 0.0
        %313 = vmatpush1.msra.mxu0 0.0
        %314 = vmatprep.subr.mxu0 0.0
        %315 = vmatpush1.msra.mxu0 0.0
        %316 = vmatprep.subr.mxu0 0.0
        %317 = vmatpush1.msra.mxu0 0.0
        %318 = vmatprep.subr.mxu0 0.0
        %319 = vmatpush1.msra.mxu0 0.0
        %320 = vmatprep.subr.mxu0 0.0
        %321 = vmatpush1.msra.mxu0 0.0
        %322 = vmatprep.subr.mxu0 0.0
        %323 = vmatpush1.msra.mxu0 0.0
        %324 = vmatprep.subr.mxu0 0.0
        %325 = vmatpush1.msra.mxu0 0.0
        %326 = vmatprep.subr.mxu0 0.0
        %327 = vmatpush1.msra.mxu0 0.0
        %328 = vmatprep.subr.mxu0 0.0
        %329 = vmatpush1.msra.mxu0 0.0
        %330 = vmatprep.subr.mxu0 0.0
        %331 = vmatpush1.msra.mxu0 0.0
        %332 = vmatprep.subr.mxu0 0.0
        %333 = vmatpush1.msra.mxu0 0.0
        %334 = vmatprep.subr.mxu0 0.0
        %335 = vmatpush1.msra.mxu0 0.0
        %336 = vmatprep.subr.mxu0 0.0
        %337 = vmatpush1.msra.mxu0 0.0
        %338 = vmatprep.mubr.f32.mxu0 0.0
        %339 = vmatmul.mubr.f32.gmra.mrb[0].mxu0 %v272
        %v340 = vpop.f32.mrb[0].mxu0
        %v341 = vadd.f32 0.0, %v340
        %v342 = vpop.f32.mrb[0].mxu0
        %343 = vdwg.mxu0
        %vm344 = vcmask 64512
        %345 = vst.msk [vmem:[%s189] sm:$0xff] %vm344, %v341
        %s346 = scalar_lea.vmem %s167, 16 [#allocation2]
        %v347 = vld [vmem:[%s346] sm:$0xff]
        %v348 = vld [vmem:[%s346 + $0x8] sm:$0xff]
        %349 = vmatprep.subr.mxu0 0.0
        %350 = vmatpush1.msra.mxu0 %v347
        %351 = vmatprep.subr.mxu0 0.0
        %352 = vmatpush1.msra.mxu0 %v348
        %353 = vmatprep.subr.mxu0 0.0
        %354 = vmatpush1.msra.mxu0 0.0
        %355 = vmatprep.subr.mxu0 0.0
        %356 = vmatpush1.msra.mxu0 0.0
        %357 = vmatprep.subr.mxu0 0.0
        %358 = vmatpush1.msra.mxu0 0.0
        %359 = vmatprep.subr.mxu0 0.0
        %360 = vmatpush1.msra.mxu0 0.0
        %361 = vmatprep.subr.mxu0 0.0
        %362 = vmatpush1.msra.mxu0 0.0
        %363 = vmatprep.subr.mxu0 0.0
        %364 = vmatpush1.msra.mxu0 0.0
        %365 = vmatprep.subr.mxu0 0.0
        %366 = vmatpush1.msra.mxu0 0.0
        %367 = vmatprep.subr.mxu0 0.0
        %368 = vmatpush1.msra.mxu0 0.0
        %369 = vmatprep.subr.mxu0 0.0
        %370 = vmatpush1.msra.mxu0 0.0
        %371 = vmatprep.subr.mxu0 0.0
        %372 = vmatpush1.msra.mxu0 0.0
        %373 = vmatprep.subr.mxu0 0.0
        %374 = vmatpush1.msra.mxu0 0.0
        %375 = vmatprep.subr.mxu0 0.0
        %376 = vmatpush1.msra.mxu0 0.0
        %377 = vmatprep.subr.mxu0 0.0
        %378 = vmatpush1.msra.mxu0 0.0
        %379 = vmatprep.subr.mxu0 0.0
        %380 = vmatpush1.msra.mxu0 0.0
        %381 = vmatprep.subr.mxu0 0.0
        %382 = vmatpush1.msra.mxu0 0.0
        %383 = vmatprep.subr.mxu0 0.0
        %384 = vmatpush1.msra.mxu0 0.0
        %385 = vmatprep.subr.mxu0 0.0
        %386 = vmatpush1.msra.mxu0 0.0
        %387 = vmatprep.subr.mxu0 0.0
        %388 = vmatpush1.msra.mxu0 0.0
        %389 = vmatprep.subr.mxu0 0.0
        %390 = vmatpush1.msra.mxu0 0.0
        %391 = vmatprep.subr.mxu0 0.0
        %392 = vmatpush1.msra.mxu0 0.0
        %393 = vmatprep.subr.mxu0 0.0
        %394 = vmatpush1.msra.mxu0 0.0
        %395 = vmatprep.subr.mxu0 0.0
        %396 = vmatpush1.msra.mxu0 0.0
        %397 = vmatprep.subr.mxu0 0.0
        %398 = vmatpush1.msra.mxu0 0.0
        %399 = vmatprep.subr.mxu0 0.0
        %400 = vmatpush1.msra.mxu0 0.0
        %401 = vmatprep.subr.mxu0 0.0
        %402 = vmatpush1.msra.mxu0 0.0
        %403 = vmatprep.subr.mxu0 0.0
        %404 = vmatpush1.msra.mxu0 0.0
        %405 = vmatprep.subr.mxu0 0.0
        %406 = vmatpush1.msra.mxu0 0.0
        %407 = vmatprep.subr.mxu0 0.0
        %408 = vmatpush1.msra.mxu0 0.0
        %409 = vmatprep.subr.mxu0 0.0
        %410 = vmatpush1.msra.mxu0 0.0
        %411 = vmatprep.subr.mxu0 0.0
        %412 = vmatpush1.msra.mxu0 0.0
        %413 = vmatprep.mubr.f32.mxu0 0.0
        %414 = vmatmul.mubr.f32.gmra.mrb[0].mxu0 %v199
        %v415 = vpop.f32.mrb[0].mxu0
        %v416 = vadd.f32 0.0, %v415
        %v417 = vpop.f32.mrb[0].mxu0
        %418 = vdwg.mxu0
        %v420 = vsel %vm197, %v416, 0
        %422 = vmatprep.subr.mxu0 0.0
        %423 = vmatpush1.msra.mxu0 %v193
        %424 = vmatprep.subr.mxu0 0.0
        %425 = vmatpush1.msra.mxu0 %v194
        %426 = vmatprep.subr.mxu0 0.0
        %427 = vmatpush1.msra.mxu0 0.0
        %428 = vmatprep.subr.mxu0 0.0
        %429 = vmatpush1.msra.mxu0 0.0
        %430 = vmatprep.subr.mxu0 0.0
        %431 = vmatpush1.msra.mxu0 0.0
        %432 = vmatprep.subr.mxu0 0.0
        %433 = vmatpush1.msra.mxu0 0.0
        %434 = vmatprep.subr.mxu0 0.0
        %435 = vmatpush1.msra.mxu0 0.0
        %436 = vmatprep.subr.mxu0 0.0
        %437 = vmatpush1.msra.mxu0 0.0
        %438 = vmatprep.subr.mxu0 0.0
        %439 = vmatpush1.msra.mxu0 0.0
        %440 = vmatprep.subr.mxu0 0.0
        %441 = vmatpush1.msra.mxu0 0.0
        %442 = vmatprep.subr.mxu0 0.0
        %443 = vmatpush1.msra.mxu0 0.0
        %444 = vmatprep.subr.mxu0 0.0
        %445 = vmatpush1.msra.mxu0 0.0
        %446 = vmatprep.subr.mxu0 0.0
        %447 = vmatpush1.msra.mxu0 0.0
        %448 = vmatprep.subr.mxu0 0.0
        %449 = vmatpush1.msra.mxu0 0.0
        %450 = vmatprep.subr.mxu0 0.0
        %451 = vmatpush1.msra.mxu0 0.0
        %452 = vmatprep.subr.mxu0 0.0
        %453 = vmatpush1.msra.mxu0 0.0
        %454 = vmatprep.subr.mxu0 0.0
        %455 = vmatpush1.msra.mxu0 0.0
        %456 = vmatprep.subr.mxu0 0.0
        %457 = vmatpush1.msra.mxu0 0.0
        %458 = vmatprep.subr.mxu0 0.0
        %459 = vmatpush1.msra.mxu0 0.0
        %460 = vmatprep.subr.mxu0 0.0
        %461 = vmatpush1.msra.mxu0 0.0
        %462 = vmatprep.subr.mxu0 0.0
        %463 = vmatpush1.msra.mxu0 0.0
        %464 = vmatprep.subr.mxu0 0.0
        %465 = vmatpush1.msra.mxu0 0.0
        %466 = vmatprep.subr.mxu0 0.0
        %467 = vmatpush1.msra.mxu0 0.0
        %468 = vmatprep.subr.mxu0 0.0
        %469 = vmatpush1.msra.mxu0 0.0
        %470 = vmatprep.subr.mxu0 0.0
        %471 = vmatpush1.msra.mxu0 0.0
        %472 = vmatprep.subr.mxu0 0.0
        %473 = vmatpush1.msra.mxu0 0.0
        %474 = vmatprep.subr.mxu0 0.0
        %475 = vmatpush1.msra.mxu0 0.0
        %476 = vmatprep.subr.mxu0 0.0
        %477 = vmatpush1.msra.mxu0 0.0
        %478 = vmatprep.subr.mxu0 0.0
        %479 = vmatpush1.msra.mxu0 0.0
        %480 = vmatprep.subr.mxu0 0.0
        %481 = vmatpush1.msra.mxu0 0.0
        %482 = vmatprep.subr.mxu0 0.0
        %483 = vmatpush1.msra.mxu0 0.0
        %484 = vmatprep.subr.mxu0 0.0
        %485 = vmatpush1.msra.mxu0 0.0
        %486 = vmatprep.mubr.f32.mxu0 0.0
        %487 = vmatmul.mubr.f32.gmra.mrb[0].mxu0 %v420
        %v488 = vpop.f32.mrb[0].mxu0
        %v489 = vadd.f32 0.0, %v488
        %v490 = vpop.f32.mrb[0].mxu0
        %491 = vdwg.mxu0
        %s492 = scalar_lea.vmem %s189, 8 [#allocation5]
        %493 = vst.msk [vmem:[%s492] sm:$0xff] %vm344, %v489
        %s494 = scalar_lea.vmem %s167, 32 [#allocation2]
        %v495 = vld [vmem:[%s494] sm:$0xff]
        %v496 = vld [vmem:[%s494 + $0x8] sm:$0xff]
        %497 = vmatprep.subr.mxu0 0.0
        %498 = vmatpush1.msra.mxu0 %v495
        %499 = vmatprep.subr.mxu0 0.0
        %500 = vmatpush1.msra.mxu0 %v496
        %501 = vmatprep.subr.mxu0 0.0
        %502 = vmatpush1.msra.mxu0 0.0
        %503 = vmatprep.subr.mxu0 0.0
        %504 = vmatpush1.msra.mxu0 0.0
        %505 = vmatprep.subr.mxu0 0.0
        %506 = vmatpush1.msra.mxu0 0.0
        %507 = vmatprep.subr.mxu0 0.0
        %508 = vmatpush1.msra.mxu0 0.0
        %509 = vmatprep.subr.mxu0 0.0
        %510 = vmatpush1.msra.mxu0 0.0
        %511 = vmatprep.subr.mxu0 0.0
        %512 = vmatpush1.msra.mxu0 0.0
        %513 = vmatprep.subr.mxu0 0.0
        %514 = vmatpush1.msra.mxu0 0.0
        %515 = vmatprep.subr.mxu0 0.0
        %516 = vmatpush1.msra.mxu0 0.0
        %517 = vmatprep.subr.mxu0 0.0
        %518 = vmatpush1.msra.mxu0 0.0
        %519 = vmatprep.subr.mxu0 0.0
        %520 = vmatpush1.msra.mxu0 0.0
        %521 = vmatprep.subr.mxu0 0.0
        %522 = vmatpush1.msra.mxu0 0.0
        %523 = vmatprep.subr.mxu0 0.0
        %524 = vmatpush1.msra.mxu0 0.0
        %525 = vmatprep.subr.mxu0 0.0
        %526 = vmatpush1.msra.mxu0 0.0
        %527 = vmatprep.subr.mxu0 0.0
        %528 = vmatpush1.msra.mxu0 0.0
        %529 = vmatprep.subr.mxu0 0.0
        %530 = vmatpush1.msra.mxu0 0.0
        %531 = vmatprep.subr.mxu0 0.0
        %532 = vmatpush1.msra.mxu0 0.0
        %533 = vmatprep.subr.mxu0 0.0
        %534 = vmatpush1.msra.mxu0 0.0
        %535 = vmatprep.subr.mxu0 0.0
        %536 = vmatpush1.msra.mxu0 0.0
        %537 = vmatprep.subr.mxu0 0.0
        %538 = vmatpush1.msra.mxu0 0.0
        %539 = vmatprep.subr.mxu0 0.0
        %540 = vmatpush1.msra.mxu0 0.0
        %541 = vmatprep.subr.mxu0 0.0
        %542 = vmatpush1.msra.mxu0 0.0
        %543 = vmatprep.subr.mxu0 0.0
        %544 = vmatpush1.msra.mxu0 0.0
        %545 = vmatprep.subr.mxu0 0.0
        %546 = vmatpush1.msra.mxu0 0.0
        %547 = vmatprep.subr.mxu0 0.0
        %548 = vmatpush1.msra.mxu0 0.0
        %549 = vmatprep.subr.mxu0 0.0
        %550 = vmatpush1.msra.mxu0 0.0
        %551 = vmatprep.subr.mxu0 0.0
        %552 = vmatpush1.msra.mxu0 0.0
        %553 = vmatprep.subr.mxu0 0.0
        %554 = vmatpush1.msra.mxu0 0.0
        %555 = vmatprep.subr.mxu0 0.0
        %556 = vmatpush1.msra.mxu0 0.0
        %557 = vmatprep.subr.mxu0 0.0
        %558 = vmatpush1.msra.mxu0 0.0
        %559 = vmatprep.subr.mxu0 0.0
        %560 = vmatpush1.msra.mxu0 0.0
        %561 = vmatprep.mubr.f32.mxu0 0.0
        %562 = vmatmul.mubr.f32.gmra.mrb[0].mxu0 %v199
        %v563 = vpop.f32.mrb[0].mxu0
        %v564 = vadd.f32 0.0, %v563
        %v565 = vpop.f32.mrb[0].mxu0
        %566 = vdwg.mxu0
        %v568 = vsel %vm197, %v564, 0
        %570 = vmatprep.subr.mxu0 0.0
        %571 = vmatpush1.msra.mxu0 %v193
        %572 = vmatprep.subr.mxu0 0.0
        %573 = vmatpush1.msra.mxu0 %v194
        %574 = vmatprep.subr.mxu0 0.0
        %575 = vmatpush1.msra.mxu0 0.0
        %576 = vmatprep.subr.mxu0 0.0
        %577 = vmatpush1.msra.mxu0 0.0
        %578 = vmatprep.subr.mxu0 0.0
        %579 = vmatpush1.msra.mxu0 0.0
        %580 = vmatprep.subr.mxu0 0.0
        %581 = vmatpush1.msra.mxu0 0.0
        %582 = vmatprep.subr.mxu0 0.0
        %583 = vmatpush1.msra.mxu0 0.0
        %584 = vmatprep.subr.mxu0 0.0
        %585 = vmatpush1.msra.mxu0 0.0
        %586 = vmatprep.subr.mxu0 0.0
        %587 = vmatpush1.msra.mxu0 0.0
        %588 = vmatprep.subr.mxu0 0.0
        %589 = vmatpush1.msra.mxu0 0.0
        %590 = vmatprep.subr.mxu0 0.0
        %591 = vmatpush1.msra.mxu0 0.0
        %592 = vmatprep.subr.mxu0 0.0
        %593 = vmatpush1.msra.mxu0 0.0
        %594 = vmatprep.subr.mxu0 0.0
        %595 = vmatpush1.msra.mxu0 0.0
        %596 = vmatprep.subr.mxu0 0.0
        %597 = vmatpush1.msra.mxu0 0.0
        %598 = vmatprep.subr.mxu0 0.0
        %599 = vmatpush1.msra.mxu0 0.0
        %600 = vmatprep.subr.mxu0 0.0
        %601 = vmatpush1.msra.mxu0 0.0
        %602 = vmatprep.subr.mxu0 0.0
        %603 = vmatpush1.msra.mxu0 0.0
        %604 = vmatprep.subr.mxu0 0.0
        %605 = vmatpush1.msra.mxu0 0.0
        %606 = vmatprep.subr.mxu0 0.0
        %607 = vmatpush1.msra.mxu0 0.0
        %608 = vmatprep.subr.mxu0 0.0
        %609 = vmatpush1.msra.mxu0 0.0
        %610 = vmatprep.subr.mxu0 0.0
        %611 = vmatpush1.msra.mxu0 0.0
        %612 = vmatprep.subr.mxu0 0.0
        %613 = vmatpush1.msra.mxu0 0.0
        %614 = vmatprep.subr.mxu0 0.0
        %615 = vmatpush1.msra.mxu0 0.0
        %616 = vmatprep.subr.mxu0 0.0
        %617 = vmatpush1.msra.mxu0 0.0
        %618 = vmatprep.subr.mxu0 0.0
        %619 = vmatpush1.msra.mxu0 0.0
        %620 = vmatprep.subr.mxu0 0.0
        %621 = vmatpush1.msra.mxu0 0.0
        %622 = vmatprep.subr.mxu0 0.0
        %623 = vmatpush1.msra.mxu0 0.0
        %624 = vmatprep.subr.mxu0 0.0
        %625 = vmatpush1.msra.mxu0 0.0
        %626 = vmatprep.subr.mxu0 0.0
        %627 = vmatpush1.msra.mxu0 0.0
        %628 = vmatprep.subr.mxu0 0.0
        %629 = vmatpush1.msra.mxu0 0.0
        %630 = vmatprep.subr.mxu0 0.0
        %631 = vmatpush1.msra.mxu0 0.0
        %632 = vmatprep.subr.mxu0 0.0
        %633 = vmatpush1.msra.mxu0 0.0
        %634 = vmatprep.mubr.f32.mxu0 0.0
        %635 = vmatmul.mubr.f32.gmra.mrb[0].mxu0 %v568
        %v636 = vpop.f32.mrb[0].mxu0
        %v637 = vadd.f32 0.0, %v636
        %v638 = vpop.f32.mrb[0].mxu0
        %639 = vdwg.mxu0
        %s640 = scalar_lea.vmem %s189, 16 [#allocation5]
        %641 = vst.msk [vmem:[%s640] sm:$0xff] %vm344, %v637
        %s642 = scalar_lea.vmem %s167, 48 [#allocation2]
        %v643 = vld [vmem:[%s642] sm:$0xff]
        %v644 = vld [vmem:[%s642 + $0x8] sm:$0xff]
        %645 = vmatprep.subr.mxu0 0.0
        %646 = vmatpush1.msra.mxu0 %v643
        %647 = vmatprep.subr.mxu0 0.0
        %648 = vmatpush1.msra.mxu0 %v644
        %649 = vmatprep.subr.mxu0 0.0
        %650 = vmatpush1.msra.mxu0 0.0
        %651 = vmatprep.subr.mxu0 0.0
        %652 = vmatpush1.msra.mxu0 0.0
        %653 = vmatprep.subr.mxu0 0.0
        %654 = vmatpush1.msra.mxu0 0.0
        %655 = vmatprep.subr.mxu0 0.0
        %656 = vmatpush1.msra.mxu0 0.0
        %657 = vmatprep.subr.mxu0 0.0
        %658 = vmatpush1.msra.mxu0 0.0
        %659 = vmatprep.subr.mxu0 0.0
        %660 = vmatpush1.msra.mxu0 0.0
        %661 = vmatprep.subr.mxu0 0.0
        %662 = vmatpush1.msra.mxu0 0.0
        %663 = vmatprep.subr.mxu0 0.0
        %664 = vmatpush1.msra.mxu0 0.0
        %665 = vmatprep.subr.mxu0 0.0
        %666 = vmatpush1.msra.mxu0 0.0
        %667 = vmatprep.subr.mxu0 0.0
        %668 = vmatpush1.msra.mxu0 0.0
        %669 = vmatprep.subr.mxu0 0.0
        %670 = vmatpush1.msra.mxu0 0.0
        %671 = vmatprep.subr.mxu0 0.0
        %672 = vmatpush1.msra.mxu0 0.0
        %673 = vmatprep.subr.mxu0 0.0
        %674 = vmatpush1.msra.mxu0 0.0
        %675 = vmatprep.subr.mxu0 0.0
        %676 = vmatpush1.msra.mxu0 0.0
        %677 = vmatprep.subr.mxu0 0.0
        %678 = vmatpush1.msra.mxu0 0.0
        %679 = vmatprep.subr.mxu0 0.0
        %680 = vmatpush1.msra.mxu0 0.0
        %681 = vmatprep.subr.mxu0 0.0
        %682 = vmatpush1.msra.mxu0 0.0
        %683 = vmatprep.subr.mxu0 0.0
        %684 = vmatpush1.msra.mxu0 0.0
        %685 = vmatprep.subr.mxu0 0.0
        %686 = vmatpush1.msra.mxu0 0.0
        %687 = vmatprep.subr.mxu0 0.0
        %688 = vmatpush1.msra.mxu0 0.0
        %689 = vmatprep.subr.mxu0 0.0
        %690 = vmatpush1.msra.mxu0 0.0
        %691 = vmatprep.subr.mxu0 0.0
        %692 = vmatpush1.msra.mxu0 0.0
        %693 = vmatprep.subr.mxu0 0.0
        %694 = vmatpush1.msra.mxu0 0.0
        %695 = vmatprep.subr.mxu0 0.0
        %696 = vmatpush1.msra.mxu0 0.0
        %697 = vmatprep.subr.mxu0 0.0
        %698 = vmatpush1.msra.mxu0 0.0
        %699 = vmatprep.subr.mxu0 0.0
        %700 = vmatpush1.msra.mxu0 0.0
        %701 = vmatprep.subr.mxu0 0.0
        %702 = vmatpush1.msra.mxu0 0.0
        %703 = vmatprep.subr.mxu0 0.0
        %704 = vmatpush1.msra.mxu0 0.0
        %705 = vmatprep.subr.mxu0 0.0
        %706 = vmatpush1.msra.mxu0 0.0
        %707 = vmatprep.subr.mxu0 0.0
        %708 = vmatpush1.msra.mxu0 0.0
        %709 = vmatprep.mubr.f32.mxu0 0.0
        %710 = vmatmul.mubr.f32.gmra.mrb[0].mxu0 %v199
        %v711 = vpop.f32.mrb[0].mxu0
        %v712 = vadd.f32 0.0, %v711
        %v713 = vpop.f32.mrb[0].mxu0
        %714 = vdwg.mxu0
        %v716 = vsel %vm197, %v712, 0
        %718 = vmatprep.subr.mxu0 0.0
        %719 = vmatpush1.msra.mxu0 %v193
        %720 = vmatprep.subr.mxu0 0.0
        %721 = vmatpush1.msra.mxu0 %v194
        %722 = vmatprep.subr.mxu0 0.0
        %723 = vmatpush1.msra.mxu0 0.0
        %724 = vmatprep.subr.mxu0 0.0
        %725 = vmatpush1.msra.mxu0 0.0
        %726 = vmatprep.subr.mxu0 0.0
        %727 = vmatpush1.msra.mxu0 0.0
        %728 = vmatprep.subr.mxu0 0.0
        %729 = vmatpush1.msra.mxu0 0.0
        %730 = vmatprep.subr.mxu0 0.0
        %731 = vmatpush1.msra.mxu0 0.0
        %732 = vmatprep.subr.mxu0 0.0
        %733 = vmatpush1.msra.mxu0 0.0
        %734 = vmatprep.subr.mxu0 0.0
        %735 = vmatpush1.msra.mxu0 0.0
        %736 = vmatprep.subr.mxu0 0.0
        %737 = vmatpush1.msra.mxu0 0.0
        %738 = vmatprep.subr.mxu0 0.0
        %739 = vmatpush1.msra.mxu0 0.0
        %740 = vmatprep.subr.mxu0 0.0
        %741 = vmatpush1.msra.mxu0 0.0
        %742 = vmatprep.subr.mxu0 0.0
        %743 = vmatpush1.msra.mxu0 0.0
        %744 = vmatprep.subr.mxu0 0.0
        %745 = vmatpush1.msra.mxu0 0.0
        %746 = vmatprep.subr.mxu0 0.0
        %747 = vmatpush1.msra.mxu0 0.0
        %748 = vmatprep.subr.mxu0 0.0
        %749 = vmatpush1.msra.mxu0 0.0
        %750 = vmatprep.subr.mxu0 0.0
        %751 = vmatpush1.msra.mxu0 0.0
        %752 = vmatprep.subr.mxu0 0.0
        %753 = vmatpush1.msra.mxu0 0.0
        %754 = vmatprep.subr.mxu0 0.0
        %755 = vmatpush1.msra.mxu0 0.0
        %756 = vmatprep.subr.mxu0 0.0
        %757 = vmatpush1.msra.mxu0 0.0
        %758 = vmatprep.subr.mxu0 0.0
        %759 = vmatpush1.msra.mxu0 0.0
        %760 = vmatprep.subr.mxu0 0.0
        %761 = vmatpush1.msra.mxu0 0.0
        %762 = vmatprep.subr.mxu0 0.0
        %763 = vmatpush1.msra.mxu0 0.0
        %764 = vmatprep.subr.mxu0 0.0
        %765 = vmatpush1.msra.mxu0 0.0
        %766 = vmatprep.subr.mxu0 0.0
        %767 = vmatpush1.msra.mxu0 0.0
        %768 = vmatprep.subr.mxu0 0.0
        %769 = vmatpush1.msra.mxu0 0.0
        %770 = vmatprep.subr.mxu0 0.0
        %771 = vmatpush1.msra.mxu0 0.0
        %772 = vmatprep.subr.mxu0 0.0
        %773 = vmatpush1.msra.mxu0 0.0
        %774 = vmatprep.subr.mxu0 0.0
        %775 = vmatpush1.msra.mxu0 0.0
        %776 = vmatprep.subr.mxu0 0.0
        %777 = vmatpush1.msra.mxu0 0.0
        %778 = vmatprep.subr.mxu0 0.0
        %779 = vmatpush1.msra.mxu0 0.0
        %780 = vmatprep.subr.mxu0 0.0
        %781 = vmatpush1.msra.mxu0 0.0
        %782 = vmatprep.mubr.f32.mxu0 0.0
        %783 = vmatmul.mubr.f32.gmra.mrb[0].mxu0 %v716
        %v784 = vpop.f32.mrb[0].mxu0
        %v785 = vadd.f32 0.0, %v784
        %v786 = vpop.f32.mrb[0].mxu0
        %787 = vdwg.mxu0
        %s788 = scalar_lea.vmem %s189, 24 [#allocation5]
        %789 = vst.msk [vmem:[%s788] sm:$0xff] %vm344, %v785
        %s790 = sand.u32 %s96, 1
        %s791 = scalar_lea.sflag [#allocation4], %s790
        %s792 = sand.u32 %s96, 1
        %s793 = smul.addr %s792, 32
        %s794 = scalar_lea.vmem [#allocation5], %s793
        // Predicated region
        $region37: #{tpu_custom_call.1} parent=31 // pred_check
          %p795 = pneg %p106
        $region38: #{tpu_custom_call.1} parent=31 // pred_check_branch
          %797 = sbr.rel (%p795) target = $region40
        $region39: #{tpu_custom_call.1} parent=31 // pred_region
          %s798 = smul.u32 4, %s20
          %s800 = ssub.s32 512, 512
          %801 = vsyncadd %s791, %s800
          %s802 = smul.addr %s798, 128
          %s803 = scalar_lea.hbm %s3, %s802
          %s804 = sshll.u32 %s794, 4
          %s805 = int_to_ptr.vmem [resolvable:$true] %s804
          %810 = dma.vmem_to_hbm [thread:$0]  %s805, 512, %s803, %s791, 128, 128, 8
        $region40: #{tpu_custom_call.1} parent=31 // pred_fallthru
          _
      $region32: #{tpu_custom_call.1} parent=5 // pred_fallthru
        _
      %p811 = scmp.le.s32.totalorder 2, %s15
      // Predicated region
      $region41: #{tpu_custom_call.1} parent=5 // pred_check
        %p812 = pneg %p811
      $region42: #{tpu_custom_call.1} parent=5 // pred_check_branch
        %814 = sbr.rel (%p812) target = $region44
      $region43: #{tpu_custom_call.1} parent=5 // pred_region
        %s815 = ssub.s32 %s15, 2
        // Predicated region
        $region45: #{tpu_custom_call.1} parent=43 // pred_check
          %p816 = pneg %p112
        $region46: #{tpu_custom_call.1} parent=43 // pred_check_branch
          %818 = sbr.rel (%p816) target = $region48
        $region47: #{tpu_custom_call.1} parent=43 // pred_region
          %s819 = sand.u32 %s97, 1
          %s820 = scalar_lea.sflag [#allocation4], %s819
          %s821 = sand.u32 %s97, 1
          %s822 = smul.addr %s821, 32
          %s823 = scalar_lea.vmem [#allocation5], %s822
          %824 = dma.done %s820, 512
        $region48: #{tpu_custom_call.1} parent=43 // pred_fallthru
          _
      $region44: #{tpu_custom_call.1} parent=5 // pred_fallthru
        _
    $region6: #{tpu_custom_call.1} parent=1 // loop_footer
      %s19 = sadd.s32 1, %s15
    $region7: #{tpu_custom_call.1} parent=1 // loop_footer_branch
      %14 = sbr.rel target = $region3
    $region8: #{tpu_custom_call.1} parent=1 // loop_exit
      _
    %825 = vsyncpa [#allocation3], 1
    %s826 = scalar_lea.sflag [#allocation3], 1
    %827 = vsyncpa %s826, 1
    %828 = vsyncpa [#allocation4], 1
    %s829 = scalar_lea.sflag [#allocation4], 1
    %830 = vsyncpa %s829, 1

</llo_original>
